<compile_context>
chip_gen: v7x
topology: tpu7x:2x2x1
jax: 0.10.0
libtpu: 0.0.40
codegen_flags: <defaults>
</compile_context>

<pallas_src>
import jax
import jax.numpy as jnp
from jax.experimental import pallas as pl
from jax.experimental.pallas import tpu as pltpu

LN_EPS = 1e-5  # nn.LayerNorm default


def _make_kernel(bt, n_l, n_p, out_dim, use_mask):
    def kernel(hl_ref, hp_ref, wl_ref, bl_ref, wp_ref, bp_ref,
               wexp_ref, bf_ref, *rest):
        if use_mask:
            mask_ref, out_ref = rest
        else:
            (out_ref,) = rest

        d_l = hl_ref.shape[-1]
        d_p = hp_ref.shape[-1]

        # Stack the batch tile into the M dimension (cheap major-dim reshape).
        xl = hl_ref[...].reshape(bt * n_l, d_l)
        xp = hp_ref[...].reshape(bt * n_p, d_p)

        def norm(x):  # LayerNorm without affine (gamma/beta folded on host), f32 stats
            mu = jnp.mean(x, axis=-1, keepdims=True)
            var = jnp.mean(jnp.square(x - mu), axis=-1, keepdims=True)
            return ((x - mu) * jax.lax.rsqrt(var + LN_EPS)).astype(jnp.bfloat16)

        # Projections: gamma and the mean's 1/c are folded into the bf16 weights,
        # beta@W is the f32 row bias.  bf16 MXU inputs, f32 accumulation.
        a = jnp.dot(norm(xl), wl_ref[...],
                    preferred_element_type=jnp.float32) + bl_ref[...]   # (bt*N_l, c)
        b = jnp.dot(norm(xp), wp_ref[...],
                    preferred_element_type=jnp.float32) + bp_ref[...]   # (bt*N_p, c)

        # mean_c(outer product) == (a @ b^T)/c: one full-tile matmul contracting
        # the last dim of both operands (no transpose materialized).
        s = jax.lax.dot_general(
            a.astype(jnp.bfloat16), b.astype(jnp.bfloat16),
            dimension_numbers=(((1,), (1,)), ((), ())),
            preferred_element_type=jnp.float32)                         # (bt*N_l, bt*N_p)

        if use_mask:
            # Remove cross-batch products with one VPU multiply (0/1 mask).
            s = s * mask_ref[...]

        # Lane-dense epilogue: expand each s[., p] into out_dim consecutive lanes
        # via one bf16 matmul against the (vertically stacked) block-sparse
        # expansion matrix, then add the pre-tiled f32 bias.
        z = jnp.dot(s.astype(jnp.bfloat16), wexp_ref[...],
                    preferred_element_type=jnp.float32) + bf_ref[...]
        out_ref[...] = z.reshape(bt, n_l, n_p * out_dim)

    return kernel


def _vmem_block_bytes(bt, n_l, n_p, d_l, d_p, c, out_dim):
    """Rough per-step VMEM footprint (default double-buffering included)."""
    io = 2 * 4 * bt * (n_l * d_l + n_p * d_p + n_l * n_p * out_dim)      # f32 act/out
    w = 2 * (2 * (d_l * c + d_p * c + bt * n_p * n_p * out_dim)          # bf16 weights
             + 4 * (2 * c + n_p * out_dim + bt * bt * n_l * n_p))        # f32 biases/mask
    tmp = 4 * (bt * (n_l * d_l + n_p * d_p) + bt * (n_l + n_p) * c
               + (bt * n_l) * (bt * n_p) + bt * n_l * n_p * out_dim)     # f32 temps
    return io + w + tmp


def _pick_batch_tile(B, n_l, n_p, d_l, d_p, c, out_dim,
                     max_rows=256, vmem_budget=40 << 20):
    """Largest divisor of B whose per-step footprint fits a conservative VMEM
    budget (sized against v7x's 64 MiB/TC) and keeps the fused cross-batch
    matmul at MXU-friendly row counts.  No forced multi-point grid: at tiny
    sizes extra grid steps are pure per-step pipeline overhead."""
    best = 1
    for bt in range(1, B + 1):
        if B % bt:
            continue
        if bt > 1 and bt * max(n_l, n_p) > max_rows:
            continue
        if _vmem_block_bytes(bt, n_l, n_p, d_l, d_p, c, out_dim) <= vmem_budget:
            best = bt
    return best


def outer_product_module(h_l, h_p, params, *, bt=None):
    """h_l: [B, N_l, D_l], h_p: [B, N_p, D_p] -> [B, N_l, N_p, out_dim]."""
    B, N_l, D_l = h_l.shape
    _, N_p, D_p = h_p.shape
    c = params["wl"].shape[1]
    out_dim = params["wf"].shape[1]

    if bt is None:
        bt = _pick_batch_tile(B, N_l, N_p, D_l, D_p, c, out_dim)
    assert B % bt == 0, (B, bt)
    use_mask = bt > 1

    # ---- host-side parameter folding (done once, outside the kernel) ----
    f32 = jnp.float32
    wl_scaled = params["wl"].astype(f32) * (1.0 / c)                      # fold mean 1/c
    wl_fused = (params["gl"].reshape(D_l, 1) * wl_scaled).astype(jnp.bfloat16)
    bl_row = (params["bl"].reshape(1, D_l) @ wl_scaled).astype(f32)       # (1, c)
    wp_fused = (params["gp"].reshape(D_p, 1)
                * params["wp"].astype(f32)).astype(jnp.bfloat16)
    bp_row = (params["bp"].reshape(1, D_p) @ params["wp"].astype(f32)).astype(f32)

    wf = params["wf"].reshape(out_dim).astype(f32)
    bf = params["bf"].reshape(out_dim).astype(f32)
    eye = jnp.eye(N_p, dtype=f32)
    # W_expand[p, p*out_dim + o] = wf[o]; stacked vertically bt times so the
    # (bt*N_l, bt*N_p) masked pair matmul feeds it directly.
    w_expand = (eye[:, :, None] * wf[None, None, :]).reshape(N_p, N_p * out_dim)
    w_expand_stacked = jnp.tile(w_expand, (bt, 1)).astype(jnp.bfloat16)
    bf_tiled = jnp.tile(bf[None, :], (1, N_p))                            # (1, N_p*out_dim)

    in_specs = [
        pl.BlockSpec((bt, N_l, D_l), lambda i: (i, 0, 0)),                # h_l
        pl.BlockSpec((bt, N_p, D_p), lambda i: (i, 0, 0)),                # h_p
        pl.BlockSpec((D_l, c), lambda i: (0, 0)),                         # W_l fused (bf16)
        pl.BlockSpec((1, c), lambda i: (0, 0)),                           # beta_l @ W_l
        pl.BlockSpec((D_p, c), lambda i: (0, 0)),                         # W_p fused (bf16)
        pl.BlockSpec((1, c), lambda i: (0, 0)),                           # beta_p @ W_p
        pl.BlockSpec((bt * N_p, N_p * out_dim), lambda i: (0, 0)),        # W_expand (bf16)
        pl.BlockSpec((1, N_p * out_dim), lambda i: (0, 0)),               # bias (tiled)
    ]
    inputs = [h_l, h_p, wl_fused, bl_row, wp_fused, bp_row,
              w_expand_stacked, bf_tiled]
    if use_mask:
        # Precomputed block-diagonal 0/1 mask removing cross-batch products.
        ids_l = jnp.repeat(jnp.arange(bt, dtype=jnp.int32), N_l)
        ids_p = jnp.repeat(jnp.arange(bt, dtype=jnp.int32), N_p)
        mask = (ids_l[:, None] == ids_p[None, :]).astype(f32)
        in_specs.append(pl.BlockSpec((bt * N_l, bt * N_p), lambda i: (0, 0)))
        inputs.append(mask)

    # Conservative VMEM request (cap well under v7x's 64 MiB/TC).
    vmem_limit = int(min(48 << 20,
                         max(8 << 20,
                             2 * _vmem_block_bytes(bt, N_l, N_p, D_l, D_p,
                                                   c, out_dim))))

    kernel = _make_kernel(bt, N_l, N_p, out_dim, use_mask)

    out_flat = pl.pallas_call(
        kernel,
        out_shape=jax.ShapeDtypeStruct((B, N_l, N_p * out_dim), jnp.float32),
        grid_spec=pltpu.PrefetchScalarGridSpec(
            num_scalar_prefetch=0,
            grid=(B // bt,),
            in_specs=in_specs,
            out_specs=pl.BlockSpec((bt, N_l, N_p * out_dim),
                                   lambda i: (i, 0, 0)),
        ),
        compiler_params=pltpu.CompilerParams(
            dimension_semantics=("parallel",),
            vmem_limit_bytes=vmem_limit),
    )(*inputs)

    return out_flat.reshape(B, N_l, N_p, out_dim)


def reference(h_l, h_p, params):
    """Plain-JAX re-statement of the PyTorch forward (for verification)."""
    def ln(x, g, b):
        mu = x.mean(-1, keepdims=True)
        var = jnp.square(x - mu).mean(-1, keepdims=True)
        return (x - mu) / jnp.sqrt(var + LN_EPS) * g + b

    hl = ln(h_l, params["gl"], params["bl"]) @ params["wl"]       # (B, N_l, c)
    hp = ln(h_p, params["gp"], params["bp"]) @ params["wp"]       # (B, N_p, c)
    s = jnp.mean(hl[:, :, None, :] * hp[:, None, :, :], axis=-1, keepdims=True)
    return s * params["wf"].reshape(1, 1, 1, -1) + params["bf"].reshape(1, 1, 1, -1)


def init_params(key, inp_dim, inp_dim2, c, out_dim):
    ks = jax.random.split(key, 7)
    # LayerNorm affine params (kept 2D [1, D] for TPU-friendly layout).
    gl = 1.0 + 0.1 * jax.random.normal(ks[0], (1, inp_dim), jnp.float32)
    bl = 0.1 * jax.random.normal(ks[1], (1, inp_dim), jnp.float32)
    gp = 1.0 + 0.1 * jax.random.normal(ks[2], (1, inp_dim2), jnp.float32)
    bp = 0.1 * jax.random.normal(ks[3], (1, inp_dim2), jnp.float32)
    # Linear weights stored transposed (in, out); bias=False for linear_l/linear_p.
    wl = jax.random.normal(ks[4], (inp_dim, c), jnp.float32) / jnp.sqrt(inp_dim)
    wp = jax.random.normal(ks[5], (inp_dim2, c), jnp.float32) / jnp.sqrt(inp_dim2)
    # linear_final: nn.Linear(1, out_dim) -> weight (out_dim, 1), bias (out_dim,)
    kf1, kf2 = jax.random.split(ks[6])
    wf = jax.random.normal(kf1, (1, out_dim), jnp.float32)   # weight[:, 0] row
    bf = 0.1 * jax.random.normal(kf2, (1, out_dim), jnp.float32)
    return dict(gl=gl, bl=bl, gp=gp, bp=bp, wl=wl, wp=wp, wf=wf, bf=bf)


if __name__ == "__main__":
    B, N_l, N_p = 2, 16, 16
    inp_dim, inp_dim2 = 32, 24
    c, out_dim = 16, 32

    key = jax.random.PRNGKey(0)
    k_l, k_p, k_params = jax.random.split(key, 3)
    h_l = jax.random.normal(k_l, (B, N_l, inp_dim), jnp.float32)
    h_p = jax.random.normal(k_p, (B, N_p, inp_dim2), jnp.float32)
    params = init_params(k_params, inp_dim, inp_dim2, c, out_dim)

    out = outer_product_module(h_l, h_p, params)
    out = jax.block_until_ready(out)

    ref = reference(h_l, h_p, params)
    assert out.shape == (B, N_l, N_p, out_dim), out.shape
    # bf16 MXU inputs (projections, pair matmul, expansion) -> bf16-class tolerance.
    max_err = float(jnp.max(jnp.abs(out - ref)))
    assert jnp.allclose(out, ref, rtol=2e-2, atol=2e-2), max_err

    print("KERNEL_OK")
</pallas_src>

<mosaic_0001>
module attributes {stable_mosaic.version = 11 : i64} {
  func.func @kernel(%arg0: i32, %arg1: memref<2x16x32xf32, #tpu.memory_space<vmem>>, %arg2: memref<2x16x24xf32, #tpu.memory_space<vmem>>, %arg3: memref<32x16xbf16, #tpu.memory_space<vmem>>, %arg4: memref<1x16xf32, #tpu.memory_space<vmem>>, %arg5: memref<24x16xbf16, #tpu.memory_space<vmem>>, %arg6: memref<1x16xf32, #tpu.memory_space<vmem>>, %arg7: memref<32x512xbf16, #tpu.memory_space<vmem>>, %arg8: memref<1x512xf32, #tpu.memory_space<vmem>>, %arg9: memref<32x32xf32, #tpu.memory_space<vmem>>, %arg10: memref<2x16x512xf32, #tpu.memory_space<vmem>>) attributes {dimension_semantics = [#tpu.dimension_semantics<parallel>], iteration_bounds = array<i64: 1>, scalar_prefetch = 0 : i64, scratch_operands = 0 : i64, tpu.core_type = #tpu.core_type<tc>, window_params = [{transform_indices = @transform_0, window_bounds = array<i64: 2, 16, 32>}, {transform_indices = @transform_1, window_bounds = array<i64: 2, 16, 24>}, {pipeline_mode = #tpu.pipeline_mode<synchronous>, transform_indices = @transform_2, window_bounds = array<i64: 32, 16>}, {pipeline_mode = #tpu.pipeline_mode<synchronous>, transform_indices = @transform_3, window_bounds = array<i64: 1, 16>}, {pipeline_mode = #tpu.pipeline_mode<synchronous>, transform_indices = @transform_4, window_bounds = array<i64: 24, 16>}, {pipeline_mode = #tpu.pipeline_mode<synchronous>, transform_indices = @transform_5, window_bounds = array<i64: 1, 16>}, {pipeline_mode = #tpu.pipeline_mode<synchronous>, transform_indices = @transform_6, window_bounds = array<i64: 32, 512>}, {pipeline_mode = #tpu.pipeline_mode<synchronous>, transform_indices = @transform_7, window_bounds = array<i64: 1, 512>}, {pipeline_mode = #tpu.pipeline_mode<synchronous>, transform_indices = @transform_8, window_bounds = array<i64: 32, 32>}, {transform_indices = @transform_9, window_bounds = array<i64: 2, 16, 512>}]} {
    %c0 = arith.constant 0 : index
    %c0_0 = arith.constant 0 : index
    %c0_1 = arith.constant 0 : index
    %0 = vector.load %arg1[%c0, %c0_0, %c0_1] : memref<2x16x32xf32, #tpu.memory_space<vmem>>, vector<2x16x32xf32>
    %1 = vector.shape_cast %0 : vector<2x16x32xf32> to vector<32x32xf32>
    %c0_2 = arith.constant 0 : index
    %c0_3 = arith.constant 0 : index
    %c0_4 = arith.constant 0 : index
    %2 = vector.load %arg2[%c0_2, %c0_3, %c0_4] : memref<2x16x24xf32, #tpu.memory_space<vmem>>, vector<2x16x24xf32>
    %3 = vector.shape_cast %2 : vector<2x16x24xf32> to vector<32x24xf32>
    %cst = arith.constant dense<0.000000e+00> : vector<32xf32>
    %4 = vector.multi_reduction <add>, %1, %cst [1] : vector<32x32xf32> to vector<32xf32>
    %5 = vector.shape_cast %4 : vector<32xf32> to vector<32x1xf32>
    %cst_5 = arith.constant 3.200000e+01 : f32
    %6 = vector.broadcast %cst_5 : f32 to vector<32x1xf32>
    %7 = arith.divf %5, %6 : vector<32x1xf32>
    %8 = vector.broadcast %7 : vector<32x1xf32> to vector<32x32xf32>
    %9 = arith.subf %1, %8 : vector<32x32xf32>
    %10 = arith.mulf %9, %9 : vector<32x32xf32>
    %cst_6 = arith.constant dense<0.000000e+00> : vector<32xf32>
    %11 = vector.multi_reduction <add>, %10, %cst_6 [1] : vector<32x32xf32> to vector<32xf32>
    %12 = vector.shape_cast %11 : vector<32xf32> to vector<32x1xf32>
    %cst_7 = arith.constant 3.200000e+01 : f32
    %13 = vector.broadcast %cst_7 : f32 to vector<32x1xf32>
    %14 = arith.divf %12, %13 : vector<32x1xf32>
    %15 = vector.broadcast %7 : vector<32x1xf32> to vector<32x32xf32>
    %16 = arith.subf %1, %15 : vector<32x32xf32>
    %cst_8 = arith.constant 9.99999974E-6 : f32
    %17 = vector.broadcast %cst_8 : f32 to vector<32x1xf32>
    %18 = arith.addf %14, %17 : vector<32x1xf32>
    %19 = math.rsqrt %18 : vector<32x1xf32>
    %20 = vector.broadcast %19 : vector<32x1xf32> to vector<32x32xf32>
    %21 = arith.mulf %16, %20 : vector<32x32xf32>
    %22 = arith.truncf %21 : vector<32x32xf32> to vector<32x32xbf16>
    %c0_9 = arith.constant 0 : index
    %c0_10 = arith.constant 0 : index
    %23 = vector.load %arg3[%c0_9, %c0_10] : memref<32x16xbf16, #tpu.memory_space<vmem>>, vector<32x16xbf16>
    %cst_11 = arith.constant dense<0.000000e+00> : vector<32x16xf32>
    %24 = tpu.matmul %22, %23, %cst_11 {dimension_numbers = #tpu.dot_dimension_numbers<[1], [0], [0], [1], [0, 0, 1, 1], [], []>} : vector<32x32xbf16>, vector<32x16xbf16>, vector<32x16xf32> -> vector<32x16xf32>
    %c0_12 = arith.constant 0 : index
    %c0_13 = arith.constant 0 : index
    %25 = vector.load %arg4[%c0_12, %c0_13] : memref<1x16xf32, #tpu.memory_space<vmem>>, vector<1x16xf32>
    %26 = vector.broadcast %25 : vector<1x16xf32> to vector<32x16xf32>
    %27 = arith.addf %24, %26 : vector<32x16xf32>
    %cst_14 = arith.constant dense<0.000000e+00> : vector<32xf32>
    %28 = vector.multi_reduction <add>, %3, %cst_14 [1] : vector<32x24xf32> to vector<32xf32>
    %29 = vector.shape_cast %28 : vector<32xf32> to vector<32x1xf32>
    %cst_15 = arith.constant 2.400000e+01 : f32
    %30 = vector.broadcast %cst_15 : f32 to vector<32x1xf32>
    %31 = arith.divf %29, %30 : vector<32x1xf32>
    %32 = vector.broadcast %31 : vector<32x1xf32> to vector<32x24xf32>
    %33 = arith.subf %3, %32 : vector<32x24xf32>
    %34 = arith.mulf %33, %33 : vector<32x24xf32>
    %cst_16 = arith.constant dense<0.000000e+00> : vector<32xf32>
    %35 = vector.multi_reduction <add>, %34, %cst_16 [1] : vector<32x24xf32> to vector<32xf32>
    %36 = vector.shape_cast %35 : vector<32xf32> to vector<32x1xf32>
    %cst_17 = arith.constant 2.400000e+01 : f32
    %37 = vector.broadcast %cst_17 : f32 to vector<32x1xf32>
    %38 = arith.divf %36, %37 : vector<32x1xf32>
    %39 = vector.broadcast %31 : vector<32x1xf32> to vector<32x24xf32>
    %40 = arith.subf %3, %39 : vector<32x24xf32>
    %cst_18 = arith.constant 9.99999974E-6 : f32
    %41 = vector.broadcast %cst_18 : f32 to vector<32x1xf32>
    %42 = arith.addf %38, %41 : vector<32x1xf32>
    %43 = math.rsqrt %42 : vector<32x1xf32>
    %44 = vector.broadcast %43 : vector<32x1xf32> to vector<32x24xf32>
    %45 = arith.mulf %40, %44 : vector<32x24xf32>
    %46 = arith.truncf %45 : vector<32x24xf32> to vector<32x24xbf16>
    %c0_19 = arith.constant 0 : index
    %c0_20 = arith.constant 0 : index
    %47 = vector.load %arg5[%c0_19, %c0_20] : memref<24x16xbf16, #tpu.memory_space<vmem>>, vector<24x16xbf16>
    %cst_21 = arith.constant dense<0.000000e+00> : vector<32x16xf32>
    %48 = tpu.matmul %46, %47, %cst_21 {dimension_numbers = #tpu.dot_dimension_numbers<[1], [0], [0], [1], [0, 0, 1, 1], [], []>} : vector<32x24xbf16>, vector<24x16xbf16>, vector<32x16xf32> -> vector<32x16xf32>
    %c0_22 = arith.constant 0 : index
    %c0_23 = arith.constant 0 : index
    %49 = vector.load %arg6[%c0_22, %c0_23] : memref<1x16xf32, #tpu.memory_space<vmem>>, vector<1x16xf32>
    %50 = vector.broadcast %49 : vector<1x16xf32> to vector<32x16xf32>
    %51 = arith.addf %48, %50 : vector<32x16xf32>
    %52 = arith.truncf %27 : vector<32x16xf32> to vector<32x16xbf16>
    %53 = arith.truncf %51 : vector<32x16xf32> to vector<32x16xbf16>
    %cst_24 = arith.constant dense<0.000000e+00> : vector<32x32xf32>
    %54 = tpu.matmul %52, %53, %cst_24 {dimension_numbers = #tpu.dot_dimension_numbers<[1], [1], [0], [0], [0, 0, 1, 0], [], []>} : vector<32x16xbf16>, vector<32x16xbf16>, vector<32x32xf32> -> vector<32x32xf32>
    %c0_25 = arith.constant 0 : index
    %c0_26 = arith.constant 0 : index
    %55 = vector.load %arg9[%c0_25, %c0_26] : memref<32x32xf32, #tpu.memory_space<vmem>>, vector<32x32xf32>
    %56 = arith.mulf %54, %55 : vector<32x32xf32>
    %57 = arith.truncf %56 : vector<32x32xf32> to vector<32x32xbf16>
    %c0_27 = arith.constant 0 : index
    %c0_28 = arith.constant 0 : index
    %58 = vector.load %arg7[%c0_27, %c0_28] : memref<32x512xbf16, #tpu.memory_space<vmem>>, vector<32x512xbf16>
    %cst_29 = arith.constant dense<0.000000e+00> : vector<32x512xf32>
    %59 = tpu.matmul %57, %58, %cst_29 {dimension_numbers = #tpu.dot_dimension_numbers<[1], [0], [0], [1], [0, 0, 1, 1], [], []>} : vector<32x32xbf16>, vector<32x512xbf16>, vector<32x512xf32> -> vector<32x512xf32>
    %c0_30 = arith.constant 0 : index
    %c0_31 = arith.constant 0 : index
    %60 = vector.load %arg8[%c0_30, %c0_31] : memref<1x512xf32, #tpu.memory_space<vmem>>, vector<1x512xf32>
    %61 = vector.broadcast %60 : vector<1x512xf32> to vector<32x512xf32>
    %62 = arith.addf %59, %61 : vector<32x512xf32>
    %63 = vector.shape_cast %62 : vector<32x512xf32> to vector<2x16x512xf32>
    %c0_32 = arith.constant 0 : index
    %c0_33 = arith.constant 0 : index
    %c0_34 = arith.constant 0 : index
    %64 = vector.load %arg10[%c0_32, %c0_33, %c0_34] : memref<2x16x512xf32, #tpu.memory_space<vmem>>, vector<2x16x512xf32>
    tpu.vector_store %arg10[%c0_32, %c0_33, %c0_34], %63 {strides = array<i32>} : memref<2x16x512xf32, #tpu.memory_space<vmem>>, vector<2x16x512xf32>,
    return
  }
  func.func @transform_0(%arg0: i32) -> (i32, i32, i32) {
    %c0_i32 = arith.constant 0 : i32
    %c0_i32_0 = arith.constant 0 : i32
    %c0_i32_1 = arith.constant 0 : i32
    return %arg0, %c0_i32, %c0_i32_0 : i32, i32, i32
  }
  func.func @transform_1(%arg0: i32) -> (i32, i32, i32) {
    %c0_i32 = arith.constant 0 : i32
    %c0_i32_0 = arith.constant 0 : i32
    %c0_i32_1 = arith.constant 0 : i32
    return %arg0, %c0_i32, %c0_i32_0 : i32, i32, i32
  }
  func.func @transform_2(%arg0: i32) -> (i32, i32) {
    %c0_i32 = arith.constant 0 : i32
    %c0_i32_0 = arith.constant 0 : i32
    %c0_i32_1 = arith.constant 0 : i32
    return %c0_i32, %c0_i32_0 : i32, i32
  }
  func.func @transform_3(%arg0: i32) -> (i32, i32) {
    %c0_i32 = arith.constant 0 : i32
    %c0_i32_0 = arith.constant 0 : i32
    %c0_i32_1 = arith.constant 0 : i32
    return %c0_i32, %c0_i32_0 : i32, i32
  }
  func.func @transform_4(%arg0: i32) -> (i32, i32) {
    %c0_i32 = arith.constant 0 : i32
    %c0_i32_0 = arith.constant 0 : i32
    %c0_i32_1 = arith.constant 0 : i32
    return %c0_i32, %c0_i32_0 : i32, i32
  }
  func.func @transform_5(%arg0: i32) -> (i32, i32) {
    %c0_i32 = arith.constant 0 : i32
    %c0_i32_0 = arith.constant 0 : i32
    %c0_i32_1 = arith.constant 0 : i32
    return %c0_i32, %c0_i32_0 : i32, i32
  }
  func.func @transform_6(%arg0: i32) -> (i32, i32) {
    %c0_i32 = arith.constant 0 : i32
    %c0_i32_0 = arith.constant 0 : i32
    %c0_i32_1 = arith.constant 0 : i32
    return %c0_i32, %c0_i32_0 : i32, i32
  }
  func.func @transform_7(%arg0: i32) -> (i32, i32) {
    %c0_i32 = arith.constant 0 : i32
    %c0_i32_0 = arith.constant 0 : i32
    %c0_i32_1 = arith.constant 0 : i32
    return %c0_i32, %c0_i32_0 : i32, i32
  }
  func.func @transform_8(%arg0: i32) -> (i32, i32) {
    %c0_i32 = arith.constant 0 : i32
    %c0_i32_0 = arith.constant 0 : i32
    %c0_i32_1 = arith.constant 0 : i32
    return %c0_i32, %c0_i32_0 : i32, i32
  }
  func.func @transform_9(%arg0: i32) -> (i32, i32, i32) {
    %c0_i32 = arith.constant 0 : i32
    %c0_i32_0 = arith.constant 0 : i32
    %c0_i32_1 = arith.constant 0 : i32
    return %arg0, %c0_i32, %c0_i32_0 : i32, i32, i32
  }
}

</mosaic_0001>

<llo_original>
// kernel: tpu_custom_call.1
$region0: #{tpu_custom_call.1}
  #allocation0 [shape = 'u32[]', space=smem, size = 0x4, offset = 0x4, fixed_abs, tag = 'smem constant byte address 0x4 - core index']
  #allocation1 [shape = 'u32[144,128]{1,0:T(1,128)}', space=vmem, size = 0x12000, scoped, tag = 'internal scratch']
  %s0 = inlined_call_operand.hbm [shape: f32[2,16,32], index: 0, kind: input, shape index: {}]
  %s1 = inlined_call_operand.hbm [shape: f32[2,16,24], index: 1, kind: input, shape index: {}]
  %s2 = inlined_call_operand.vmem [shape: bf16[32,16], index: 2, kind: input, shape index: {}]
  %s3 = inlined_call_operand.vmem [shape: f32[1,16], index: 3, kind: input, shape index: {}]
  %s4 = inlined_call_operand.vmem [shape: bf16[24,16], index: 4, kind: input, shape index: {}]
  %s5 = inlined_call_operand.vmem [shape: f32[1,16], index: 5, kind: input, shape index: {}]
  %s6 = inlined_call_operand.vmem [shape: bf16[32,512], index: 6, kind: input, shape index: {}]
  %s7 = inlined_call_operand.vmem [shape: f32[1,512], index: 7, kind: input, shape index: {}]
  %s8 = inlined_call_operand.hbm [shape: f32[32,32], index: 8, kind: input, shape index: {}]
  %s9 = inlined_call_operand.hbm [shape: f32[2,16,512], index: 9, kind: output, shape index: {}]
  %s10 = sld [smem:[#allocation0]]
  $region58: #{tpu_custom_call.1} parent=0
    _
  %s12 = ssub.s32 1, %s10
  %s13 = scalar_select 0, %s12, %s10
  $region1: #{tpu_custom_call.1} parent=0
    #allocation2 [shape = 'u8[16384]{0}', space=vmem, size = 0x4000, scoped, tag = 'input window, operand 0, single buffered']
    #allocation3 [shape = 's32[1]{0}', space=sflag, size = 0x4, scoped, tag = 'scoped memory for tpu_custom_call.1']
    #allocation4 [shape = 's32[1]{0}', space=sflag, size = 0x4, scoped, tag = 'scoped memory for tpu_custom_call.1']
    #allocation5 [shape = 'u8[16384]{0}', space=vmem, size = 0x4000, scoped, tag = 'input window, operand 1, single buffered']
    #allocation6 [shape = 's32[1]{0}', space=sflag, size = 0x4, scoped, tag = 'scoped memory for tpu_custom_call.1']
    #allocation7 [shape = 'u8[16384]{0}', space=vmem, size = 0x4000, scoped, tag = 'input window, operand 8, single buffered']
    #allocation8 [shape = 'u8[65536]{0}', space=vmem, size = 0x10000, scoped, tag = 'output window, operand 0, single buffered']
    %14 = vsyncpa [#allocation3], 0
    %15 = vsyncpa [#allocation6], 0
    %16 = vsyncpa [#allocation4], 0
    // Predicated region
    $region2: #{tpu_custom_call.1} parent=1 // pred_check
      _
    $region3: #{tpu_custom_call.1} parent=1 // pred_check_branch
      %18 = sbr.rel (0) target = $region5
    $region4: #{tpu_custom_call.1} parent=1 // pred_region
      %s20 = ssub.s32 512, 512
      %21 = vsyncadd [#allocation3], %s20
      %s22 = sshll.u32 [#allocation2], 4
      %s23 = int_to_ptr.vmem [resolvable:$true] %s22
      %28 = dma.hbm_to_vmem [thread:$0]  %s0, 512, %s23, [#allocation3], 128, 128, 8
    $region5: #{tpu_custom_call.1} parent=1 // pred_fallthru
      _
    // Predicated region
    $region6: #{tpu_custom_call.1} parent=1 // pred_check
      _
    $region7: #{tpu_custom_call.1} parent=1 // pred_check_branch
      %30 = sbr.rel (0) target = $region9
    $region8: #{tpu_custom_call.1} parent=1 // pred_region
      %s32 = ssub.s32 512, 512
      %33 = vsyncadd [#allocation6], %s32
      %s34 = sshll.u32 [#allocation5], 4
      %s35 = int_to_ptr.vmem [resolvable:$true] %s34
      %40 = dma.hbm_to_vmem [thread:$0]  %s1, 512, %s35, [#allocation6], 128, 128, 8
    $region9: #{tpu_custom_call.1} parent=1 // pred_fallthru
      _
    // Predicated region
    $region10: #{tpu_custom_call.1} parent=1 // pred_check
      _
    $region11: #{tpu_custom_call.1} parent=1 // pred_check_branch
      %42 = sbr.rel (0) target = $region13
    $region12: #{tpu_custom_call.1} parent=1 // pred_region
      _
    $region13: #{tpu_custom_call.1} parent=1 // pred_fallthru
      _
    // Predicated region
    $region14: #{tpu_custom_call.1} parent=1 // pred_check
      _
    $region15: #{tpu_custom_call.1} parent=1 // pred_check_branch
      %44 = sbr.rel (0) target = $region17
    $region16: #{tpu_custom_call.1} parent=1 // pred_region
      _
    $region17: #{tpu_custom_call.1} parent=1 // pred_fallthru
      _
    // Predicated region
    $region18: #{tpu_custom_call.1} parent=1 // pred_check
      _
    $region19: #{tpu_custom_call.1} parent=1 // pred_check_branch
      %46 = sbr.rel (0) target = $region21
    $region20: #{tpu_custom_call.1} parent=1 // pred_region
      _
    $region21: #{tpu_custom_call.1} parent=1 // pred_fallthru
      _
    // Predicated region
    $region22: #{tpu_custom_call.1} parent=1 // pred_check
      _
    $region23: #{tpu_custom_call.1} parent=1 // pred_check_branch
      %48 = sbr.rel (0) target = $region25
    $region24: #{tpu_custom_call.1} parent=1 // pred_region
      _
    $region25: #{tpu_custom_call.1} parent=1 // pred_fallthru
      _
    // Predicated region
    $region26: #{tpu_custom_call.1} parent=1 // pred_check
      _
    $region27: #{tpu_custom_call.1} parent=1 // pred_check_branch
      %50 = sbr.rel (0) target = $region29
    $region28: #{tpu_custom_call.1} parent=1 // pred_region
      _
    $region29: #{tpu_custom_call.1} parent=1 // pred_fallthru
      _
    // Predicated region
    $region30: #{tpu_custom_call.1} parent=1 // pred_check
      _
    $region31: #{tpu_custom_call.1} parent=1 // pred_check_branch
      %52 = sbr.rel (0) target = $region33
    $region32: #{tpu_custom_call.1} parent=1 // pred_region
      _
    $region33: #{tpu_custom_call.1} parent=1 // pred_fallthru
      _
    // Predicated region
    $region34: #{tpu_custom_call.1} parent=1 // pred_check
      _
    $region35: #{tpu_custom_call.1} parent=1 // pred_check_branch
      %54 = sbr.rel (0) target = $region37
    $region36: #{tpu_custom_call.1} parent=1 // pred_region
      %s56 = ssub.s32 512, 512
      %57 = vsyncadd [#allocation6], %s56
      %s58 = sshll.u32 [#allocation7], 4
      %s59 = int_to_ptr.vmem [resolvable:$true] %s58
      %64 = dma.hbm_to_vmem [thread:$0]  %s8, 512, %s59, [#allocation6], 128, 128, 8
    $region37: #{tpu_custom_call.1} parent=1 // pred_fallthru
      _
    // Predicated region
    $region38: #{tpu_custom_call.1} parent=1 // pred_check
      _
    $region39: #{tpu_custom_call.1} parent=1 // pred_check_branch
      %66 = sbr.rel (0) target = $region41
    $region40: #{tpu_custom_call.1} parent=1 // pred_region
      %67 = dma.done [#allocation3], 512
    $region41: #{tpu_custom_call.1} parent=1 // pred_fallthru
      _
    // Predicated region
    $region42: #{tpu_custom_call.1} parent=1 // pred_check
      _
    $region43: #{tpu_custom_call.1} parent=1 // pred_check_branch
      %69 = sbr.rel (0) target = $region45
    $region44: #{tpu_custom_call.1} parent=1 // pred_region
      %70 = dma.done [#allocation6], 512
    $region45: #{tpu_custom_call.1} parent=1 // pred_fallthru
      _
    // Predicated region
    $region46: #{tpu_custom_call.1} parent=1 // pred_check
      _
    $region47: #{tpu_custom_call.1} parent=1 // pred_check_branch
      %72 = sbr.rel (0) target = $region49
    $region48: #{tpu_custom_call.1} parent=1 // pred_region
      %73 = dma.done [#allocation6], 512
    $region49: #{tpu_custom_call.1} parent=1 // pred_fallthru
      _
    %v75 = vld [vmem:[#allocation2] sm:$0xff]
    %v76 = vld [vmem:[#allocation2 + $0x8] sm:$0xff]
    %v77 = vld [vmem:[#allocation2 + $0x10] sm:$0xff]
    %v78 = vld [vmem:[#allocation2 + $0x18] sm:$0xff]
    %v79 = vld [vmem:[#allocation5] sm:$0xff]
    %v80 = vld [vmem:[#allocation5 + $0x8] sm:$0xff]
    %v81 = vld [vmem:[#allocation5 + $0x10] sm:$0xff]
    %v82 = vld [vmem:[#allocation5 + $0x18] sm:$0xff]
    %vm83 = vcmask 261120
    %v84 = vsel %vm83, %v75, 0.0
    %85 = vadd.xlane.f32.xlu0 %v84
    %v86 = vpop.xlane.xlu0 %85
    %v87 = vsel %vm83, %v76, 0.0
    %88 = vadd.xlane.f32.xlu0 %v87
    %v89 = vpop.xlane.xlu0 %88
    %v90 = vsel %vm83, %v77, 0.0
    %91 = vadd.xlane.f32.xlu0 %v90
    %v92 = vpop.xlane.xlu0 %91
    %v93 = vsel %vm83, %v78, 0.0
    %94 = vadd.xlane.f32.xlu0 %v93
    %v95 = vpop.xlane.xlu0 %94
    %v96 = vrcp.pop 32.0
    %v97 = vmul.f32 %v86, %v96
    %v98 = vmul.f32 %v89, %v96
    %v99 = vmul.f32 %v92, %v96
    %v100 = vmul.f32 %v95, %v96
    %v101 = vsub.f32 %v75, %v97
    %v102 = vsub.f32 %v76, %v98
    %v103 = vsub.f32 %v77, %v99
    %v104 = vsub.f32 %v78, %v100
    %v105 = vmul.f32 %v101, %v101
    %v106 = vmul.f32 %v102, %v102
    %v107 = vmul.f32 %v103, %v103
    %v108 = vmul.f32 %v104, %v104
    %v109 = vsel %vm83, %v105, 0.0
    %110 = vadd.xlane.f32.xlu0 %v109
    %v111 = vpop.xlane.xlu0 %110
    %v112 = vsel %vm83, %v106, 0.0
    %113 = vadd.xlane.f32.xlu0 %v112
    %v114 = vpop.xlane.xlu0 %113
    %v115 = vsel %vm83, %v107, 0.0
    %116 = vadd.xlane.f32.xlu0 %v115
    %v117 = vpop.xlane.xlu0 %116
    %v118 = vsel %vm83, %v108, 0.0
    %119 = vadd.xlane.f32.xlu0 %v118
    %v120 = vpop.xlane.xlu0 %119
    %v121 = vmul.f32 %v111, %v96
    %v122 = vmul.f32 %v114, %v96
    %v123 = vmul.f32 %v117, %v96
    %v124 = vmul.f32 %v120, %v96
    %v125 = vadd.f32 %v121, 1e-05
    %v126 = vadd.f32 %v122, 1e-05
    %v127 = vadd.f32 %v123, 1e-05
    %v128 = vadd.f32 %v124, 1e-05
    %v129 = vrsqrt.pop %v125
    %v130 = vrsqrt.pop %v126
    %v131 = vrsqrt.pop %v127
    %v132 = vrsqrt.pop %v128
    %v133 = vmul.f32 %v101, %v129
    %v134 = vmul.f32 %v102, %v130
    %v135 = vmul.f32 %v103, %v131
    %v136 = vmul.f32 %v104, %v132
    %v137 = vpack.c.bf16 %v134, %v133
    %v138 = vpack.c.bf16 %v136, %v135
    %v139 = vld [vmem:[%s2] sm:$0xf]
    %v140 = vld [vmem:[%s2 + $0x4] sm:$0xf]
    %v141 = vld [vmem:[%s2 + $0x8] sm:$0xf]
    %v142 = vld [vmem:[%s2 + $0xc] sm:$0xf]
    %v143 = vld [vmem:[%s3] sm:$0x1]
    %v145 = vlaneseq
    %v146 = vshrl.u32 %v145, 7
    %v147 = vsub.s32 0, %v146
    %v148 = vrot.slane %v143, %v147
    %v154 = vunpack.c.l.b16 %v139
    %v155 = vunpack.c.l.b16 %v140
    %v156 = vunpack.c.l.b16 %v141
    %v157 = vunpack.c.l.b16 %v142
    %v158 = vpack.c.b16 %v155, %v154
    %v159 = vpack.c.b16 %v157, %v156
    %v163 = vsel %vm83, %v137, 0
    %v166 = vsel %vm83, %v138, 0
    %168 = vmatprep.subr.bf16.mxu0 0
    %169 = vmatpush1.bf16.msra.mxu0 %v158
    %170 = vmatprep.subr.bf16.mxu0 0
    %171 = vmatpush1.bf16.msra.mxu0 %v159
    %172 = vmatprep.subr.bf16.mxu0 0
    %173 = vmatpush1.bf16.msra.mxu0 0
    %174 = vmatprep.subr.bf16.mxu0 0
    %175 = vmatpush1.bf16.msra.mxu0 0
    %176 = vmatprep.subr.bf16.mxu0 0
    %177 = vmatpush1.bf16.msra.mxu0 0
    %178 = vmatprep.subr.bf16.mxu0 0
    %179 = vmatpush1.bf16.msra.mxu0 0
    %180 = vmatprep.subr.bf16.mxu0 0
    %181 = vmatpush1.bf16.msra.mxu0 0
    %182 = vmatprep.subr.bf16.mxu0 0
    %183 = vmatpush1.bf16.msra.mxu0 0
    %184 = vmatprep.subr.bf16.mxu0 0
    %185 = vmatpush1.bf16.msra.mxu0 0
    %186 = vmatprep.subr.bf16.mxu0 0
    %187 = vmatpush1.bf16.msra.mxu0 0
    %188 = vmatprep.subr.bf16.mxu0 0
    %189 = vmatpush1.bf16.msra.mxu0 0
    %190 = vmatprep.subr.bf16.mxu0 0
    %191 = vmatpush1.bf16.msra.mxu0 0
    %192 = vmatprep.subr.bf16.mxu0 0
    %193 = vmatpush1.bf16.msra.mxu0 0
    %194 = vmatprep.subr.bf16.mxu0 0
    %195 = vmatpush1.bf16.msra.mxu0 0
    %196 = vmatprep.subr.bf16.mxu0 0
    %197 = vmatpush1.bf16.msra.mxu0 0
    %198 = vmatprep.subr.bf16.mxu0 0
    %199 = vmatpush1.bf16.msra.mxu0 0
    %200 = vmatprep.mubr.bf16.mxu0 0
    %201 = vmatmul.mubr.bf16.gmra.mrb[0].mxu0 %v163
    %v202 = vpop.f32.mrb[0].mxu0
    %v203 = vadd.f32 %v148, %v202
    %v204 = vpop.f32.mrb[0].mxu0
    %v205 = vpop.f32.mrb[0].mxu0
    %v206 = vadd.f32 %v148, %v205
    %v207 = vpop.f32.mrb[0].mxu0
    %208 = vmatprep.mubr.bf16.mxu0 0
    %209 = vmatmul.mubr.bf16.gmra.mrb[0].mxu0 %v166
    %v210 = vpop.f32.mrb[0].mxu0
    %v211 = vadd.f32 %v148, %v210
    %v212 = vpop.f32.mrb[0].mxu0
    %v213 = vpop.f32.mrb[0].mxu0
    %v214 = vadd.f32 %v148, %v213
    %v215 = vpop.f32.mrb[0].mxu0
    %216 = vdwg.mxu0
    %vm217 = vcmask 195584
    %v218 = vsel %vm217, %v79, 0.0
    %219 = vadd.xlane.f32.xlu0 %v218
    %v220 = vpop.xlane.xlu0 %219
    %v221 = vsel %vm217, %v80, 0.0
    %222 = vadd.xlane.f32.xlu0 %v221
    %v223 = vpop.xlane.xlu0 %222
    %v224 = vsel %vm217, %v81, 0.0
    %225 = vadd.xlane.f32.xlu0 %v224
    %v226 = vpop.xlane.xlu0 %225
    %v227 = vsel %vm217, %v82, 0.0
    %228 = vadd.xlane.f32.xlu0 %v227
    %v229 = vpop.xlane.xlu0 %228
    %v230 = vrcp.pop 24.0
    %v231 = vmul.f32 %v220, %v230
    %v232 = vmul.f32 %v223, %v230
    %v233 = vmul.f32 %v226, %v230
    %v234 = vmul.f32 %v229, %v230
    %v235 = vsub.f32 %v79, %v231
    %v236 = vsub.f32 %v80, %v232
    %v237 = vsub.f32 %v81, %v233
    %v238 = vsub.f32 %v82, %v234
    %v239 = vmul.f32 %v235, %v235
    %v240 = vmul.f32 %v236, %v236
    %v241 = vmul.f32 %v237, %v237
    %v242 = vmul.f32 %v238, %v238
    %v243 = vsel %vm217, %v239, 0.0
    %244 = vadd.xlane.f32.xlu0 %v243
    %v245 = vpop.xlane.xlu0 %244
    %v246 = vsel %vm217, %v240, 0.0
    %247 = vadd.xlane.f32.xlu0 %v246
    %v248 = vpop.xlane.xlu0 %247
    %v249 = vsel %vm217, %v241, 0.0
    %250 = vadd.xlane.f32.xlu0 %v249
    %v251 = vpop.xlane.xlu0 %250
    %v252 = vsel %vm217, %v242, 0.0
    %253 = vadd.xlane.f32.xlu0 %v252
    %v254 = vpop.xlane.xlu0 %253
    %v255 = vmul.f32 %v245, %v230
    %v256 = vmul.f32 %v248, %v230
    %v257 = vmul.f32 %v251, %v230
    %v258 = vmul.f32 %v254, %v230
    %v259 = vadd.f32 %v255, 1e-05
    %v260 = vadd.f32 %v256, 1e-05
    %v261 = vadd.f32 %v257, 1e-05
    %v262 = vadd.f32 %v258, 1e-05
    %v263 = vrsqrt.pop %v259
    %v264 = vrsqrt.pop %v260
    %v265 = vrsqrt.pop %v261
    %v266 = vrsqrt.pop %v262
    %v267 = vmul.f32 %v235, %v263
    %v268 = vmul.f32 %v236, %v264
    %v269 = vmul.f32 %v237, %v265
    %v270 = vmul.f32 %v238, %v266
    %v271 = vpack.c.bf16 %v268, %v267
    %v272 = vpack.c.bf16 %v270, %v269
    %v273 = vld [vmem:[%s4] sm:$0xf]
    %v274 = vld [vmem:[%s4 + $0x4] sm:$0xf]
    %v275 = vld [vmem:[%s4 + $0x8] sm:$0xf]
    %v276 = vld [vmem:[%s5] sm:$0x1]
    %v278 = vlaneseq
    %v279 = vshrl.u32 %v278, 7
    %v280 = vsub.s32 0, %v279
    %v281 = vrot.slane %v276, %v280
    %v286 = vunpack.c.l.b16 %v273
    %v287 = vunpack.c.l.b16 %v274
    %v288 = vunpack.c.l.b16 %v275
    %v289 = vpack.c.b16 %v287, %v286
    %v290 = vpack.c.b16 %v288, %v288
    %v293 = vsel %vm217, %v271, 0
    %v296 = vsel %vm217, %v272, 0
    %vm298 = vcmask 1043456
    %v300 = vsel %vm298, %v290, 0
    %302 = vmatprep.subr.bf16.mxu0 0
    %303 = vmatpush1.bf16.msra.mxu0 %v289
    %304 = vmatprep.subr.bf16.mxu0 0
    %305 = vmatpush1.bf16.msra.mxu0 %v300
    %306 = vmatprep.subr.bf16.mxu0 0
    %307 = vmatpush1.bf16.msra.mxu0 0
    %308 = vmatprep.subr.bf16.mxu0 0
    %309 = vmatpush1.bf16.msra.mxu0 0
    %310 = vmatprep.subr.bf16.mxu0 0
    %311 = vmatpush1.bf16.msra.mxu0 0
    %312 = vmatprep.subr.bf16.mxu0 0
    %313 = vmatpush1.bf16.msra.mxu0 0
    %314 = vmatprep.subr.bf16.mxu0 0
    %315 = vmatpush1.bf16.msra.mxu0 0
    %316 = vmatprep.subr.bf16.mxu0 0
    %317 = vmatpush1.bf16.msra.mxu0 0
    %318 = vmatprep.subr.bf16.mxu0 0
    %319 = vmatpush1.bf16.msra.mxu0 0
    %320 = vmatprep.subr.bf16.mxu0 0
    %321 = vmatpush1.bf16.msra.mxu0 0
    %322 = vmatprep.subr.bf16.mxu0 0
    %323 = vmatpush1.bf16.msra.mxu0 0
    %324 = vmatprep.subr.bf16.mxu0 0
    %325 = vmatpush1.bf16.msra.mxu0 0
    %326 = vmatprep.subr.bf16.mxu0 0
    %327 = vmatpush1.bf16.msra.mxu0 0
    %328 = vmatprep.subr.bf16.mxu0 0
    %329 = vmatpush1.bf16.msra.mxu0 0
    %330 = vmatprep.subr.bf16.mxu0 0
    %331 = vmatpush1.bf16.msra.mxu0 0
    %332 = vmatprep.subr.bf16.mxu0 0
    %333 = vmatpush1.bf16.msra.mxu0 0
    %334 = vmatprep.mubr.bf16.mxu0 0
    %335 = vmatmul.mubr.bf16.gmra.mrb[0].mxu0 %v293
    %v336 = vpop.f32.mrb[0].mxu0
    %v337 = vadd.f32 %v281, %v336
    %v338 = vpop.f32.mrb[0].mxu0
    %v339 = vpop.f32.mrb[0].mxu0
    %v340 = vadd.f32 %v281, %v339
    %v341 = vpop.f32.mrb[0].mxu0
    %342 = vmatprep.mubr.bf16.mxu0 0
    %343 = vmatmul.mubr.bf16.gmra.mrb[0].mxu0 %v296
    %v344 = vpop.f32.mrb[0].mxu0
    %v345 = vadd.f32 %v281, %v344
    %v346 = vpop.f32.mrb[0].mxu0
    %v347 = vpop.f32.mrb[0].mxu0
    %v348 = vadd.f32 %v281, %v347
    %v349 = vpop.f32.mrb[0].mxu0
    %350 = vdwg.mxu0
    %v351 = vpack.c.bf16 %v206, %v203
    %v352 = vpack.c.bf16 %v214, %v211
    %v353 = vpack.c.bf16 %v340, %v337
    %v354 = vpack.c.bf16 %v348, %v345
    %vm355 = vcmask 130048
    %v357 = vsel %vm355, %v351, 0
    %v360 = vsel %vm355, %v352, 0
    %v363 = vsel %vm355, %v353, 0
    %v366 = vsel %vm355, %v354, 0
    %368 = vmatprep.subr.bf16.mxu0 0
    %369 = vmatpush1.bf16.xpose.msra.mxu0 %v363
    %370 = vmatprep.subr.bf16.mxu0 0
    %371 = vmatpush1.bf16.xpose.msra.mxu0 %v366
    %372 = vmatprep.subr.bf16.mxu0 0
    %373 = vmatpush1.bf16.xpose.msra.mxu0 0
    %374 = vmatprep.subr.bf16.mxu0 0
    %375 = vmatpush1.bf16.xpose.msra.mxu0 0
    %376 = vmatprep.subr.bf16.mxu0 0
    %377 = vmatpush1.bf16.xpose.msra.mxu0 0
    %378 = vmatprep.subr.bf16.mxu0 0
    %379 = vmatpush1.bf16.xpose.msra.mxu0 0
    %380 = vmatprep.subr.bf16.mxu0 0
    %381 = vmatpush1.bf16.xpose.msra.mxu0 0
    %382 = vmatprep.subr.bf16.mxu0 0
    %383 = vmatpush1.bf16.xpose.msra.mxu0 0
    %384 = vmatprep.subr.bf16.mxu0 0
    %385 = vmatpush1.bf16.xpose.msra.mxu0 0
    %386 = vmatprep.subr.bf16.mxu0 0
    %387 = vmatpush1.bf16.xpose.msra.mxu0 0
    %388 = vmatprep.subr.bf16.mxu0 0
    %389 = vmatpush1.bf16.xpose.msra.mxu0 0
    %390 = vmatprep.subr.bf16.mxu0 0
    %391 = vmatpush1.bf16.xpose.msra.mxu0 0
    %392 = vmatprep.subr.bf16.mxu0 0
    %393 = vmatpush1.bf16.xpose.msra.mxu0 0
    %394 = vmatprep.subr.bf16.mxu0 0
    %395 = vmatpush1.bf16.xpose.msra.mxu0 0
    %396 = vmatprep.subr.bf16.mxu0 0
    %397 = vmatpush1.bf16.xpose.msra.mxu0 0
    %398 = vmatprep.subr.bf16.mxu0 0
    %399 = vmatpush1.bf16.xpose.msra.mxu0 0
    %400 = vmatprep.mubr.bf16.mxu0 0
    %401 = vmatmul.mubr.bf16.gmra.mrb[0].mxu0 %v357
    %v402 = vpop.f32.mrb[0].mxu0
    %v403 = vadd.f32 0.0, %v402
    %v404 = vpop.f32.mrb[0].mxu0
    %v405 = vpop.f32.mrb[0].mxu0
    %v406 = vadd.f32 0.0, %v405
    %v407 = vpop.f32.mrb[0].mxu0
    %408 = vmatprep.mubr.bf16.mxu0 0
    %409 = vmatmul.mubr.bf16.gmra.mrb[0].mxu0 %v360
    %v410 = vpop.f32.mrb[0].mxu0
    %v411 = vadd.f32 0.0, %v410
    %v412 = vpop.f32.mrb[0].mxu0
    %v413 = vpop.f32.mrb[0].mxu0
    %v414 = vadd.f32 0.0, %v413
    %v415 = vpop.f32.mrb[0].mxu0
    %416 = vdwg.mxu0
    %v417 = vld [vmem:[#allocation7] sm:$0xff]
    %v418 = vld [vmem:[#allocation7 + $0x8] sm:$0xff]
    %v419 = vld [vmem:[#allocation7 + $0x10] sm:$0xff]
    %v420 = vld [vmem:[#allocation7 + $0x18] sm:$0xff]
    %v421 = vmul.f32 %v403, %v417
    %v422 = vmul.f32 %v406, %v418
    %v423 = vmul.f32 %v411, %v419
    %v424 = vmul.f32 %v414, %v420
    %v425 = vpack.c.bf16 %v422, %v421
    %v426 = vpack.c.bf16 %v424, %v423
    %v427 = vld [vmem:[%s6] sm:$0xff]
    %v428 = vld [vmem:[%s6 + $0x8] sm:$0xff]
    %v429 = vld [vmem:[%s6 + $0x10] sm:$0xff]
    %v430 = vld [vmem:[%s6 + $0x18] sm:$0xff]
    %v431 = vld [vmem:[%s6 + $0x20] sm:$0xff]
    %v432 = vld [vmem:[%s6 + $0x28] sm:$0xff]
    %v433 = vld [vmem:[%s6 + $0x30] sm:$0xff]
    %v434 = vld [vmem:[%s6 + $0x38] sm:$0xff]
    %v435 = vld [vmem:[%s7] sm:$0xf]
    %v437 = vlaneseq
    %v438 = vshrl.u32 %v437, 7
    %v439 = vsub.s32 0, %v438
    %v440 = vrot.slane %v435, %v439
    %v441 = vlaneseq
    %v442 = vshrl.u32 %v441, 7
    %v443 = vsub.s32 1, %v442
    %v444 = vrot.slane %v435, %v443
    %v445 = vlaneseq
    %v446 = vshrl.u32 %v445, 7
    %v447 = vsub.s32 2, %v446
    %v448 = vrot.slane %v435, %v447
    %v449 = vlaneseq
    %v450 = vshrl.u32 %v449, 7
    %v451 = vsub.s32 3, %v450
    %v452 = vrot.slane %v435, %v451
    %v465 = vunpack.c.l.b16 %v427
    %v466 = vunpack.c.h.b16 %v427
    %v467 = vunpack.c.l.b16 %v428
    %v468 = vunpack.c.h.b16 %v428
    %v469 = vunpack.c.l.b16 %v429
    %v470 = vunpack.c.h.b16 %v429
    %v471 = vunpack.c.l.b16 %v430
    %v472 = vunpack.c.h.b16 %v430
    %v473 = vunpack.c.l.b16 %v431
    %v474 = vunpack.c.h.b16 %v431
    %v475 = vunpack.c.l.b16 %v432
    %v476 = vunpack.c.h.b16 %v432
    %v477 = vunpack.c.l.b16 %v433
    %v478 = vunpack.c.h.b16 %v433
    %v479 = vunpack.c.l.b16 %v434
    %v480 = vunpack.c.h.b16 %v434
    %v481 = vpack.c.b16 %v469, %v465
    %v482 = vpack.c.b16 %v470, %v466
    %v483 = vpack.c.b16 %v471, %v467
    %v484 = vpack.c.b16 %v472, %v468
    %v485 = vpack.c.b16 %v477, %v473
    %v486 = vpack.c.b16 %v478, %v474
    %v487 = vpack.c.b16 %v479, %v475
    %v488 = vpack.c.b16 %v480, %v476
    %v498 = vsel %vm83, %v425, 0
    %v501 = vsel %vm83, %v426, 0
    %503 = vmatprep.subr.bf16.mxu0 %v482
    %504 = vmatpush1.bf16.msra.mxu0 %v481
    %505 = vmatprep.subr.bf16.mxu0 %v486
    %506 = vmatpush1.bf16.msra.mxu0 %v485
    %507 = vmatprep.subr.bf16.mxu0 0
    %508 = vmatpush1.bf16.msra.mxu0 0
    %509 = vmatprep.subr.bf16.mxu0 0
    %510 = vmatpush1.bf16.msra.mxu0 0
    %511 = vmatprep.subr.bf16.mxu0 0
    %512 = vmatpush1.bf16.msra.mxu0 0
    %513 = vmatprep.subr.bf16.mxu0 0
    %514 = vmatpush1.bf16.msra.mxu0 0
    %515 = vmatprep.subr.bf16.mxu0 0
    %516 = vmatpush1.bf16.msra.mxu0 0
    %517 = vmatprep.subr.bf16.mxu0 0
    %518 = vmatpush1.bf16.msra.mxu0 0
    %519 = vmatprep.subr.bf16.mxu0 0
    %520 = vmatpush1.bf16.msra.mxu0 0
    %521 = vmatprep.subr.bf16.mxu0 0
    %522 = vmatpush1.bf16.msra.mxu0 0
    %523 = vmatprep.subr.bf16.mxu0 0
    %524 = vmatpush1.bf16.msra.mxu0 0
    %525 = vmatprep.subr.bf16.mxu0 0
    %526 = vmatpush1.bf16.msra.mxu0 0
    %527 = vmatprep.subr.bf16.mxu0 0
    %528 = vmatpush1.bf16.msra.mxu0 0
    %529 = vmatprep.subr.bf16.mxu0 0
    %530 = vmatpush1.bf16.msra.mxu0 0
    %531 = vmatprep.subr.bf16.mxu0 0
    %532 = vmatpush1.bf16.msra.mxu0 0
    %533 = vmatprep.subr.bf16.mxu0 0
    %534 = vmatpush1.bf16.msra.mxu0 0
    %535 = vmatprep.mubr.bf16.mxu0 0
    %536 = vmatmul.mubr.bf16.gmra.mrb[0].mxu0 %v498
    %v537 = vpop.f32.mrb[0].mxu0
    %v538 = vadd.f32 %v440, %v537
    %v539 = vpop.f32.mrb[0].mxu0
    %v540 = vadd.f32 %v444, %v539
    %v541 = vpop.f32.mrb[0].mxu0
    %v542 = vadd.f32 %v440, %v541
    %v543 = vpop.f32.mrb[0].mxu0
    %v544 = vadd.f32 %v444, %v543
    %545 = vmatprep.mubr.bf16.mxu0 0
    %546 = vmatmul.mubr.bf16.gmra.mrb[0].mxu0 %v501
    %v547 = vpop.f32.mrb[0].mxu0
    %v548 = vadd.f32 %v440, %v547
    %v549 = vpop.f32.mrb[0].mxu0
    %v550 = vadd.f32 %v444, %v549
    %v551 = vpop.f32.mrb[0].mxu0
    %v552 = vadd.f32 %v440, %v551
    %v553 = vpop.f32.mrb[0].mxu0
    %v554 = vadd.f32 %v444, %v553
    %555 = vdwg.mxu0
    %556 = vmatprep.subr.bf16.mxu0 %v484
    %557 = vmatpush1.bf16.msra.mxu0 %v483
    %558 = vmatprep.subr.bf16.mxu0 %v488
    %559 = vmatpush1.bf16.msra.mxu0 %v487
    %560 = vmatprep.subr.bf16.mxu0 0
    %561 = vmatpush1.bf16.msra.mxu0 0
    %562 = vmatprep.subr.bf16.mxu0 0
    %563 = vmatpush1.bf16.msra.mxu0 0
    %564 = vmatprep.subr.bf16.mxu0 0
    %565 = vmatpush1.bf16.msra.mxu0 0
    %566 = vmatprep.subr.bf16.mxu0 0
    %567 = vmatpush1.bf16.msra.mxu0 0
    %568 = vmatprep.subr.bf16.mxu0 0
    %569 = vmatpush1.bf16.msra.mxu0 0
    %570 = vmatprep.subr.bf16.mxu0 0
    %571 = vmatpush1.bf16.msra.mxu0 0
    %572 = vmatprep.subr.bf16.mxu0 0
    %573 = vmatpush1.bf16.msra.mxu0 0
    %574 = vmatprep.subr.bf16.mxu0 0
    %575 = vmatpush1.bf16.msra.mxu0 0
    %576 = vmatprep.subr.bf16.mxu0 0
    %577 = vmatpush1.bf16.msra.mxu0 0
    %578 = vmatprep.subr.bf16.mxu0 0
    %579 = vmatpush1.bf16.msra.mxu0 0
    %580 = vmatprep.subr.bf16.mxu0 0
    %581 = vmatpush1.bf16.msra.mxu0 0
    %582 = vmatprep.subr.bf16.mxu0 0
    %583 = vmatpush1.bf16.msra.mxu0 0
    %584 = vmatprep.subr.bf16.mxu0 0
    %585 = vmatpush1.bf16.msra.mxu0 0
    %586 = vmatprep.subr.bf16.mxu0 0
    %587 = vmatpush1.bf16.msra.mxu0 0
    %588 = vmatprep.mubr.bf16.mxu0 0
    %589 = vmatmul.mubr.bf16.gmra.mrb[0].mxu0 %v498
    %v590 = vpop.f32.mrb[0].mxu0
    %v591 = vadd.f32 %v448, %v590
    %v592 = vpop.f32.mrb[0].mxu0
    %v593 = vadd.f32 %v452, %v592
    %v594 = vpop.f32.mrb[0].mxu0
    %v595 = vadd.f32 %v448, %v594
    %v596 = vpop.f32.mrb[0].mxu0
    %v597 = vadd.f32 %v452, %v596
    %598 = vmatprep.mubr.bf16.mxu0 0
    %599 = vmatmul.mubr.bf16.gmra.mrb[0].mxu0 %v501
    %v600 = vpop.f32.mrb[0].mxu0
    %v601 = vadd.f32 %v448, %v600
    %v602 = vpop.f32.mrb[0].mxu0
    %v603 = vadd.f32 %v452, %v602
    %v604 = vpop.f32.mrb[0].mxu0
    %v605 = vadd.f32 %v448, %v604
    %v606 = vpop.f32.mrb[0].mxu0
    %v607 = vadd.f32 %v452, %v606
    %608 = vdwg.mxu0
    %609 = vst [vmem:[#allocation8] sm:$0xff] %v538
    %610 = vst [vmem:[#allocation8 + $0x8] sm:$0xff] %v540
    %611 = vst [vmem:[#allocation8 + $0x10] sm:$0xff] %v591
    %612 = vst [vmem:[#allocation8 + $0x18] sm:$0xff] %v593
    %613 = vst [vmem:[#allocation8 + $0x20] sm:$0xff] %v542
    %614 = vst [vmem:[#allocation8 + $0x28] sm:$0xff] %v544
    %615 = vst [vmem:[#allocation8 + $0x30] sm:$0xff] %v595
    %616 = vst [vmem:[#allocation8 + $0x38] sm:$0xff] %v597
    %617 = vst [vmem:[#allocation8 + $0x40] sm:$0xff] %v548
    %618 = vst [vmem:[#allocation8 + $0x48] sm:$0xff] %v550
    %619 = vst [vmem:[#allocation8 + $0x50] sm:$0xff] %v601
    %620 = vst [vmem:[#allocation8 + $0x58] sm:$0xff] %v603
    %621 = vst [vmem:[#allocation8 + $0x60] sm:$0xff] %v552
    %622 = vst [vmem:[#allocation8 + $0x68] sm:$0xff] %v554
    %623 = vst [vmem:[#allocation8 + $0x70] sm:$0xff] %v605
    %624 = vst [vmem:[#allocation8 + $0x78] sm:$0xff] %v607
    // Predicated region
    $region50: #{tpu_custom_call.1} parent=1 // pred_check
      _
    $region51: #{tpu_custom_call.1} parent=1 // pred_check_branch
      %626 = sbr.rel (0) target = $region53
    $region52: #{tpu_custom_call.1} parent=1 // pred_region
      %s628 = ssub.s32 2048, 2048
      %629 = vsyncadd [#allocation4], %s628
      %s630 = sshll.u32 [#allocation8], 4
      %s631 = int_to_ptr.vmem [resolvable:$true] %s630
      %636 = dma.vmem_to_hbm [thread:$0]  %s631, 2048, %s9, [#allocation4], 512, 512, 32
    $region53: #{tpu_custom_call.1} parent=1 // pred_fallthru
      _
    // Predicated region
    $region54: #{tpu_custom_call.1} parent=1 // pred_check
      _
    $region55: #{tpu_custom_call.1} parent=1 // pred_check_branch
      %638 = sbr.rel (0) target = $region57
    $region56: #{tpu_custom_call.1} parent=1 // pred_region
      %639 = dma.done [#allocation4], 2048
    $region57: #{tpu_custom_call.1} parent=1 // pred_fallthru
      _
    %640 = vsyncpa [#allocation3], 1
    %641 = vsyncpa [#allocation6], 1
    %642 = vsyncpa [#allocation4], 1

</llo_original>
